<compile_context>
chip_gen: v5e
topology: v5e:2x2
jax: 0.10.0
libtpu: 0.0.40
codegen_flags: <defaults>
</compile_context>

<pallas_src>
import functools

import jax
import jax.numpy as jnp
from jax.experimental import pallas as pl
from jax.experimental.pallas import tpu as pltpu

BN_EPS = 1e-5
LANE = 128
SUBLANE = 8


def _round_up(x, m):
    return ((x + m - 1) // m) * m


def _pad2d(a, rows, cols):
    pr, pc = rows - a.shape[0], cols - a.shape[1]
    if pr == 0 and pc == 0:
        return a
    return jnp.pad(a, ((0, pr), (0, pc)))


# --------------------------------------------------------------------------- #
# Kernel
# --------------------------------------------------------------------------- #
def _actor_kernel(num_layers, x_ref, scale_ref, shift_ref, *refs):
    # refs layout: (w, b) * num_layers, out
    out_ref = refs[-1]
    wb = refs[:-1]

    # BatchNorm as a per-feature FMA (f32).  Padded feature columns have
    # scale=shift=0, so they stay zero.
    h = x_ref[...] * scale_ref[...] + shift_ref[...]          # (TB, S_pad) f32

    for li in range(num_layers):
        w = wb[2 * li][...]                                   # bf16, zero-padded
        b = wb[2 * li + 1][...]                               # f32,  (1, out_pad)
        z = jnp.dot(h.astype(jnp.bfloat16), w,
                    preferred_element_type=jnp.float32) + b   # f32 accumulate
        if li < num_layers - 1:
            h = jnp.maximum(z, 0.0)                           # relu (VPU)
        else:
            h = jnp.tanh(z)                                   # output tanh (EUP)

    out_ref[...] = h.astype(out_ref.dtype)


# --------------------------------------------------------------------------- #
# Parameter preparation (do once per parameter update, NOT per forward)
# --------------------------------------------------------------------------- #
def prepare_actor_params(weights, biases):
    """Pad every feature dim to a multiple of 128; cast weights to bf16.

    weights: list of (in, out) f32 matrices; biases: list of (1, out) rows.
    Returns (w_pad_bf16, b_pad_f32, dims, dims_pad).
    """
    dims = [weights[0].shape[0]] + [w.shape[1] for w in weights]
    dims_pad = [_round_up(d, LANE) for d in dims]
    w_pad = [
        _pad2d(w, dims_pad[i], dims_pad[i + 1]).astype(jnp.bfloat16)
        for i, w in enumerate(weights)
    ]
    b_pad = [
        _pad2d(b, 1, dims_pad[i + 1]).astype(jnp.float32)
        for i, b in enumerate(biases)
    ]
    return w_pad, b_pad, dims, dims_pad


def _vmem_estimate_bytes(batch_tile, dims_pad, w_pad, b_pad):
    """Rough VMEM footprint: Pallas double-buffers every input/output block."""
    s_pad, a_pad = dims_pad[0], dims_pad[-1]
    x_tile = batch_tile * s_pad * 4
    o_tile = batch_tile * a_pad * 4
    scale_shift = 2 * s_pad * 4
    params = sum(int(w.size) * w.dtype.itemsize for w in w_pad)
    params += sum(int(b.size) * b.dtype.itemsize for b in b_pad)
    temps = 3 * batch_tile * max(dims_pad) * 4        # in-body activation temps
    return 2 * (x_tile + o_tile + scale_shift + params) + temps


# --------------------------------------------------------------------------- #
# Forward
# --------------------------------------------------------------------------- #
def actor_forward(x, gamma, beta, w_pad, b_pad, dims, dims_pad, *,
                  batch_tile=None):
    """Actor forward pass.

    x:      (batch, state_size) float32
    gamma:  (1, state_size)  BN weight      beta: (1, state_size) BN bias
    w_pad, b_pad, dims, dims_pad: output of prepare_actor_params().
    """
    num_layers = len(w_pad)
    batch, state_size = x.shape
    s_pad, a_pad = dims_pad[0], dims_pad[-1]
    action_size = dims[-1]

    # ---- BN training-mode stats in ONE fused pass over x (biased variance) ----
    mean = jnp.mean(x, axis=0, keepdims=True)                    # (1, S)
    meansq = jnp.mean(x * x, axis=0, keepdims=True)              # (1, S)
    var = jnp.maximum(meansq - mean * mean, 0.0)                 # (1, S)
    scale = gamma * jax.lax.rsqrt(var + BN_EPS)                  # (1, S)
    shift = beta - mean * scale                                  # (1, S)
    scale_p = _pad2d(scale, 1, s_pad)                            # zeros in pad
    shift_p = _pad2d(shift, 1, s_pad)

    # ---- Pad ONLY the feature axis of x; batch axis stays ragged ----
    x_p = _pad2d(x, batch, s_pad)

    # ---- Batch tiling heuristic ----
    if batch_tile is None:
        if batch >= 1024:
            batch_tile = 512            # big, MXU-friendly tiles (mult. of 256)
        elif batch > SUBLANE:
            # >= 2 grid steps so the 'parallel' axis can shard across both
            # TensorCores on v7x (no-op on single-TC v5e/v6e).
            batch_tile = _round_up(-(-batch // 2), SUBLANE)
        else:
            batch_tile = batch          # block == full (tiny) batch dim is legal

    # Shrink the tile if the (double-buffered) footprint would not fit
    # comfortably under v7x's 64 MiB physical VMEM.
    budget = 40 << 20
    while (batch_tile > SUBLANE and
           _vmem_estimate_bytes(batch_tile, dims_pad, w_pad, b_pad) > budget):
        batch_tile = max(SUBLANE, _round_up(batch_tile // 2, SUBLANE))

    num_tiles = -(-batch // batch_tile)

    est = _vmem_estimate_bytes(batch_tile, dims_pad, w_pad, b_pad)
    vmem_limit = int(min(max(2 * est, 32 << 20), 64 << 20))

    # ---- Specs ----
    in_specs = [
        pl.BlockSpec((batch_tile, s_pad), lambda i: (i, 0)),     # x tile
        pl.BlockSpec((1, s_pad), lambda i: (0, 0)),              # BN scale
        pl.BlockSpec((1, s_pad), lambda i: (0, 0)),              # BN shift
    ]
    args = [x_p, scale_p, shift_p]
    for li in range(num_layers):
        args.append(w_pad[li])
        args.append(b_pad[li])
        # Resident parameter blocks: same block every grid step.
        in_specs.append(pl.BlockSpec(w_pad[li].shape, lambda i: (0, 0)))
        in_specs.append(pl.BlockSpec(b_pad[li].shape, lambda i: (0, 0)))

    kernel = functools.partial(_actor_kernel, num_layers)

    out_p = pl.pallas_call(
        kernel,
        out_shape=jax.ShapeDtypeStruct((batch, a_pad), jnp.float32),
        grid=(num_tiles,),
        in_specs=in_specs,
        out_specs=pl.BlockSpec((batch_tile, a_pad), lambda i: (i, 0)),
        compiler_params=pltpu.CompilerParams(
            dimension_semantics=("parallel",),
            vmem_limit_bytes=vmem_limit,
        ),
    )(*args)

    return out_p[:, :action_size]


# --------------------------------------------------------------------------- #
# Init mirroring the PyTorch module's reset_parameters()
# --------------------------------------------------------------------------- #
def init_actor_params(key, state_size, action_size, hidden_layer_sizes):
    """hidden_init() in the reference uses weight.size()[0] == out_features as
    'fan_in'; we replicate that.  Biases keep nn.Linear's default
    U(-1/sqrt(in_features), 1/sqrt(in_features)) (reset_parameters leaves them).
    """
    sizes = [state_size] + list(hidden_layer_sizes) + [action_size]
    weights, biases = [], []
    for i in range(len(sizes) - 1):
        fan_in, fan_out = sizes[i], sizes[i + 1]
        kw, kb, key = jax.random.split(key, 3)
        if i < len(sizes) - 2:
            lim = 1.0 / jnp.sqrt(jnp.float32(fan_out))   # hidden_init: weight.size()[0]
        else:
            lim = jnp.float32(0.003)                     # output layer
        # weight stored as (in, out)  ==  PyTorch (out, in) transposed
        w = jax.random.uniform(kw, (fan_in, fan_out), jnp.float32, -lim, lim)
        b_lim = 1.0 / jnp.sqrt(jnp.float32(fan_in))
        b = jax.random.uniform(kb, (1, fan_out), jnp.float32, -b_lim, b_lim)
        weights.append(w)
        biases.append(b)
    gamma = jnp.ones((1, state_size), jnp.float32)   # BatchNorm1d weight
    beta = jnp.zeros((1, state_size), jnp.float32)   # BatchNorm1d bias
    return gamma, beta, weights, biases


def _reference(x, gamma, beta, weights, biases):
    mean = jnp.mean(x, axis=0, keepdims=True)
    var = jnp.mean((x - mean) ** 2, axis=0, keepdims=True)
    h = (x - mean) * jax.lax.rsqrt(var + BN_EPS) * gamma + beta
    for i, (w, b) in enumerate(zip(weights, biases)):
        z = h @ w + b
        h = jnp.maximum(z, 0.0) if i < len(weights) - 1 else jnp.tanh(z)
    return h


if __name__ == "__main__":
    # Small shapes consistent with the module's forward.
    batch = 8
    state_size = 16
    action_size = 4
    hidden_layer_sizes = [32, 32]

    key = jax.random.PRNGKey(0)
    k_x, k_x2, k_p = jax.random.split(key, 3)

    x = jax.random.normal(k_x, (batch, state_size), jnp.float32)
    gamma, beta, weights, biases = init_actor_params(
        k_p, state_size, action_size, hidden_layer_sizes)

    # Pad/cast parameters once (parameter-update time), reuse across forwards.
    w_pad, b_pad, dims, dims_pad = prepare_actor_params(weights, biases)

    out = actor_forward(x, gamma, beta, w_pad, b_pad, dims, dims_pad)
    jax.block_until_ready(out)

    ref = _reference(x, gamma, beta, weights, biases)
    assert out.shape == (batch, action_size)
    # bf16 matmul inputs (f32 accumulate) -> slightly looser tolerance.
    assert jnp.allclose(out, ref, atol=2e-2, rtol=2e-2), \
        float(jnp.max(jnp.abs(out - ref)))

    # Second check: medium batch exercises >=2 grid steps and a ragged
    # boundary block (no batch-axis padding in HBM).
    x2 = jax.random.normal(k_x2, (20, state_size), jnp.float32)
    out2 = actor_forward(x2, gamma, beta, w_pad, b_pad, dims, dims_pad)
    jax.block_until_ready(out2)
    ref2 = _reference(x2, gamma, beta, weights, biases)
    assert out2.shape == (20, action_size)
    assert jnp.allclose(out2, ref2, atol=2e-2, rtol=2e-2), \
        float(jnp.max(jnp.abs(out2 - ref2)))

    print("KERNEL_OK")
</pallas_src>

<mosaic_0001>
module attributes {stable_mosaic.version = 11 : i64} {
  func.func @_actor_kernel(%arg0: i32, %arg1: memref<8x128xf32, #tpu.memory_space<vmem>>, %arg2: memref<1x128xf32, #tpu.memory_space<vmem>>, %arg3: memref<1x128xf32, #tpu.memory_space<vmem>>, %arg4: memref<128x128xbf16, #tpu.memory_space<vmem>>, %arg5: memref<1x128xf32, #tpu.memory_space<vmem>>, %arg6: memref<128x128xbf16, #tpu.memory_space<vmem>>, %arg7: memref<1x128xf32, #tpu.memory_space<vmem>>, %arg8: memref<128x128xbf16, #tpu.memory_space<vmem>>, %arg9: memref<1x128xf32, #tpu.memory_space<vmem>>, %arg10: memref<8x128xf32, #tpu.memory_space<vmem>>) attributes {dimension_semantics = [#tpu.dimension_semantics<parallel>], iteration_bounds = array<i64: 1>, scalar_prefetch = 0 : i64, scratch_operands = 0 : i64, tpu.core_type = #tpu.core_type<tc>, window_params = [{transform_indices = @transform_0, window_bounds = array<i64: 8, 128>}, {pipeline_mode = #tpu.pipeline_mode<synchronous>, transform_indices = @transform_1, window_bounds = array<i64: 1, 128>}, {pipeline_mode = #tpu.pipeline_mode<synchronous>, transform_indices = @transform_2, window_bounds = array<i64: 1, 128>}, {pipeline_mode = #tpu.pipeline_mode<synchronous>, transform_indices = @transform_3, window_bounds = array<i64: 128, 128>}, {pipeline_mode = #tpu.pipeline_mode<synchronous>, transform_indices = @transform_4, window_bounds = array<i64: 1, 128>}, {pipeline_mode = #tpu.pipeline_mode<synchronous>, transform_indices = @transform_5, window_bounds = array<i64: 128, 128>}, {pipeline_mode = #tpu.pipeline_mode<synchronous>, transform_indices = @transform_6, window_bounds = array<i64: 1, 128>}, {pipeline_mode = #tpu.pipeline_mode<synchronous>, transform_indices = @transform_7, window_bounds = array<i64: 128, 128>}, {pipeline_mode = #tpu.pipeline_mode<synchronous>, transform_indices = @transform_8, window_bounds = array<i64: 1, 128>}, {transform_indices = @transform_9, window_bounds = array<i64: 8, 128>}]} {
    %c0 = arith.constant 0 : index
    %c0_0 = arith.constant 0 : index
    %0 = vector.load %arg1[%c0, %c0_0] : memref<8x128xf32, #tpu.memory_space<vmem>>, vector<8x128xf32>
    %c0_1 = arith.constant 0 : index
    %c0_2 = arith.constant 0 : index
    %1 = vector.load %arg2[%c0_1, %c0_2] : memref<1x128xf32, #tpu.memory_space<vmem>>, vector<1x128xf32>
    %2 = vector.broadcast %1 : vector<1x128xf32> to vector<8x128xf32>
    %3 = arith.mulf %0, %2 : vector<8x128xf32>
    %c0_3 = arith.constant 0 : index
    %c0_4 = arith.constant 0 : index
    %4 = vector.load %arg3[%c0_3, %c0_4] : memref<1x128xf32, #tpu.memory_space<vmem>>, vector<1x128xf32>
    %5 = vector.broadcast %4 : vector<1x128xf32> to vector<8x128xf32>
    %6 = arith.addf %3, %5 : vector<8x128xf32>
    %c0_5 = arith.constant 0 : index
    %c0_6 = arith.constant 0 : index
    %7 = vector.load %arg4[%c0_5, %c0_6] : memref<128x128xbf16, #tpu.memory_space<vmem>>, vector<128x128xbf16>
    %c0_7 = arith.constant 0 : index
    %c0_8 = arith.constant 0 : index
    %8 = vector.load %arg5[%c0_7, %c0_8] : memref<1x128xf32, #tpu.memory_space<vmem>>, vector<1x128xf32>
    %9 = arith.truncf %6 : vector<8x128xf32> to vector<8x128xbf16>
    %cst = arith.constant dense<0.000000e+00> : vector<8x128xf32>
    %10 = tpu.matmul %9, %7, %cst {dimension_numbers = #tpu.dot_dimension_numbers<[1], [0], [0], [1], [0, 0, 1, 1], [], []>} : vector<8x128xbf16>, vector<128x128xbf16>, vector<8x128xf32> -> vector<8x128xf32>
    %11 = vector.broadcast %8 : vector<1x128xf32> to vector<8x128xf32>
    %12 = arith.addf %10, %11 : vector<8x128xf32>
    %cst_9 = arith.constant 0.000000e+00 : f32
    %13 = vector.broadcast %cst_9 : f32 to vector<8x128xf32>
    %14 = arith.maximumf %12, %13 : vector<8x128xf32>
    %c0_10 = arith.constant 0 : index
    %c0_11 = arith.constant 0 : index
    %15 = vector.load %arg6[%c0_10, %c0_11] : memref<128x128xbf16, #tpu.memory_space<vmem>>, vector<128x128xbf16>
    %c0_12 = arith.constant 0 : index
    %c0_13 = arith.constant 0 : index
    %16 = vector.load %arg7[%c0_12, %c0_13] : memref<1x128xf32, #tpu.memory_space<vmem>>, vector<1x128xf32>
    %17 = arith.truncf %14 : vector<8x128xf32> to vector<8x128xbf16>
    %cst_14 = arith.constant dense<0.000000e+00> : vector<8x128xf32>
    %18 = tpu.matmul %17, %15, %cst_14 {dimension_numbers = #tpu.dot_dimension_numbers<[1], [0], [0], [1], [0, 0, 1, 1], [], []>} : vector<8x128xbf16>, vector<128x128xbf16>, vector<8x128xf32> -> vector<8x128xf32>
    %19 = vector.broadcast %16 : vector<1x128xf32> to vector<8x128xf32>
    %20 = arith.addf %18, %19 : vector<8x128xf32>
    %cst_15 = arith.constant 0.000000e+00 : f32
    %21 = vector.broadcast %cst_15 : f32 to vector<8x128xf32>
    %22 = arith.maximumf %20, %21 : vector<8x128xf32>
    %c0_16 = arith.constant 0 : index
    %c0_17 = arith.constant 0 : index
    %23 = vector.load %arg8[%c0_16, %c0_17] : memref<128x128xbf16, #tpu.memory_space<vmem>>, vector<128x128xbf16>
    %c0_18 = arith.constant 0 : index
    %c0_19 = arith.constant 0 : index
    %24 = vector.load %arg9[%c0_18, %c0_19] : memref<1x128xf32, #tpu.memory_space<vmem>>, vector<1x128xf32>
    %25 = arith.truncf %22 : vector<8x128xf32> to vector<8x128xbf16>
    %cst_20 = arith.constant dense<0.000000e+00> : vector<8x128xf32>
    %26 = tpu.matmul %25, %23, %cst_20 {dimension_numbers = #tpu.dot_dimension_numbers<[1], [0], [0], [1], [0, 0, 1, 1], [], []>} : vector<8x128xbf16>, vector<128x128xbf16>, vector<8x128xf32> -> vector<8x128xf32>
    %27 = vector.broadcast %24 : vector<1x128xf32> to vector<8x128xf32>
    %28 = arith.addf %26, %27 : vector<8x128xf32>
    %29 = math.tanh %28 : vector<8x128xf32>
    %c0_21 = arith.constant 0 : index
    %c0_22 = arith.constant 0 : index
    %30 = vector.load %arg10[%c0_21, %c0_22] : memref<8x128xf32, #tpu.memory_space<vmem>>, vector<8x128xf32>
    tpu.vector_store %arg10[%c0_21, %c0_22], %29 {strides = array<i32>} : memref<8x128xf32, #tpu.memory_space<vmem>>, vector<8x128xf32>,
    return
  }
  func.func @transform_0(%arg0: i32) -> (i32, i32) {
    %c0_i32 = arith.constant 0 : i32
    %c0_i32_0 = arith.constant 0 : i32
    return %arg0, %c0_i32 : i32, i32
  }
  func.func @transform_1(%arg0: i32) -> (i32, i32) {
    %c0_i32 = arith.constant 0 : i32
    %c0_i32_0 = arith.constant 0 : i32
    %c0_i32_1 = arith.constant 0 : i32
    return %c0_i32, %c0_i32_0 : i32, i32
  }
  func.func @transform_2(%arg0: i32) -> (i32, i32) {
    %c0_i32 = arith.constant 0 : i32
    %c0_i32_0 = arith.constant 0 : i32
    %c0_i32_1 = arith.constant 0 : i32
    return %c0_i32, %c0_i32_0 : i32, i32
  }
  func.func @transform_3(%arg0: i32) -> (i32, i32) {
    %c0_i32 = arith.constant 0 : i32
    %c0_i32_0 = arith.constant 0 : i32
    %c0_i32_1 = arith.constant 0 : i32
    return %c0_i32, %c0_i32_0 : i32, i32
  }
  func.func @transform_4(%arg0: i32) -> (i32, i32) {
    %c0_i32 = arith.constant 0 : i32
    %c0_i32_0 = arith.constant 0 : i32
    %c0_i32_1 = arith.constant 0 : i32
    return %c0_i32, %c0_i32_0 : i32, i32
  }
  func.func @transform_5(%arg0: i32) -> (i32, i32) {
    %c0_i32 = arith.constant 0 : i32
    %c0_i32_0 = arith.constant 0 : i32
    %c0_i32_1 = arith.constant 0 : i32
    return %c0_i32, %c0_i32_0 : i32, i32
  }
  func.func @transform_6(%arg0: i32) -> (i32, i32) {
    %c0_i32 = arith.constant 0 : i32
    %c0_i32_0 = arith.constant 0 : i32
    %c0_i32_1 = arith.constant 0 : i32
    return %c0_i32, %c0_i32_0 : i32, i32
  }
  func.func @transform_7(%arg0: i32) -> (i32, i32) {
    %c0_i32 = arith.constant 0 : i32
    %c0_i32_0 = arith.constant 0 : i32
    %c0_i32_1 = arith.constant 0 : i32
    return %c0_i32, %c0_i32_0 : i32, i32
  }
  func.func @transform_8(%arg0: i32) -> (i32, i32) {
    %c0_i32 = arith.constant 0 : i32
    %c0_i32_0 = arith.constant 0 : i32
    %c0_i32_1 = arith.constant 0 : i32
    return %c0_i32, %c0_i32_0 : i32, i32
  }
  func.func @transform_9(%arg0: i32) -> (i32, i32) {
    %c0_i32 = arith.constant 0 : i32
    %c0_i32_0 = arith.constant 0 : i32
    return %arg0, %c0_i32 : i32, i32
  }
}

</mosaic_0001>

<llo_original>
// kernel: tpu_custom_call.1
$region0: #{tpu_custom_call.1}
  #allocation0 [shape = 'u32[]', space=smem, size = 0x4, offset = 0x4, fixed_abs, tag = 'smem constant byte address 0x4 - core index']
  #allocation1 [shape = 'u32[72,128]{1,0:T(1,128)}', space=vmem, size = 0x9000, scoped, tag = 'internal scratch']
  %s0 = inlined_call_operand.hbm [shape: f32[8,128], index: 0, kind: input, shape index: {}]
  %s1 = inlined_call_operand.hbm [shape: f32[1,128], index: 1, kind: input, shape index: {}]
  %s2 = inlined_call_operand.vmem [shape: f32[1,128], index: 2, kind: input, shape index: {}]
  %s3 = inlined_call_operand.hbm [shape: bf16[128,128], index: 3, kind: input, shape index: {}]
  %s4 = inlined_call_operand.vmem [shape: f32[1,128], index: 4, kind: input, shape index: {}]
  %s5 = inlined_call_operand.hbm [shape: bf16[128,128], index: 5, kind: input, shape index: {}]
  %s6 = inlined_call_operand.vmem [shape: f32[1,128], index: 6, kind: input, shape index: {}]
  %s7 = inlined_call_operand.hbm [shape: bf16[128,128], index: 7, kind: input, shape index: {}]
  %s8 = inlined_call_operand.vmem [shape: f32[1,128], index: 8, kind: input, shape index: {}]
  %s9 = inlined_call_operand.hbm [shape: f32[8,128], index: 9, kind: output, shape index: {}]
  %s10 = sld [smem:[#allocation0]]
  $region66: #{tpu_custom_call.1} parent=0
    _
  %s12 = ssub.s32 1, %s10
  %s13 = scalar_select 0, %s12, %s10
  $region1: #{tpu_custom_call.1} parent=0
    #allocation2 [shape = 'u8[4096]{0}', space=vmem, size = 0x1000, scoped, tag = 'input window, operand 0, single buffered']
    #allocation3 [shape = 's32[1]{0}', space=sflag, size = 0x4, scoped, tag = 'scoped memory for tpu_custom_call.1']
    #allocation4 [shape = 's32[1]{0}', space=sflag, size = 0x4, scoped, tag = 'scoped memory for tpu_custom_call.1']
    #allocation5 [shape = 'u8[512]{0}', space=vmem, size = 0x400, scoped, tag = 'input window, operand 1, single buffered']
    #allocation6 [shape = 's32[1]{0}', space=sflag, size = 0x4, scoped, tag = 'scoped memory for tpu_custom_call.1']
    #allocation7 [shape = 'u8[32768]{0}', space=vmem, size = 0x8000, scoped, tag = 'input window, operand 3, single buffered']
    #allocation8 [shape = 'u8[32768]{0}', space=vmem, size = 0x8000, scoped, tag = 'input window, operand 5, single buffered']
    #allocation9 [shape = 's32[1]{0}', space=sflag, size = 0x4, scoped, tag = 'scoped memory for tpu_custom_call.1']
    #allocation10 [shape = 'u8[32768]{0}', space=vmem, size = 0x8000, scoped, tag = 'input window, operand 7, single buffered']
    #allocation11 [shape = 'u8[4096]{0}', space=vmem, size = 0x1000, scoped, tag = 'output window, operand 0, single buffered']
    %14 = vsyncpa [#allocation3], 0
    %15 = vsyncpa [#allocation6], 0
    %16 = vsyncpa [#allocation9], 0
    %17 = vsyncpa [#allocation4], 0
    // Predicated region
    $region2: #{tpu_custom_call.1} parent=1 // pred_check
      _
    $region3: #{tpu_custom_call.1} parent=1 // pred_check_branch
      %19 = sbr.rel (0) target = $region5
    $region4: #{tpu_custom_call.1} parent=1 // pred_region
      %21 = vsyncadd [#allocation3], 0
      %s23 = sshll.u32 %s0, 4
      %s24 = int_to_ptr.hbm [resolvable:$true] %s23
      %s25 = sshll.u32 [#allocation2], 4
      %s26 = int_to_ptr.vmem [resolvable:$true] %s25
      %28 = dma.hbm_to_vmem [thread:$0]  %s24, 128, %s26, [#allocation3]
    $region5: #{tpu_custom_call.1} parent=1 // pred_fallthru
      _
    // Predicated region
    $region6: #{tpu_custom_call.1} parent=1 // pred_check
      _
    $region7: #{tpu_custom_call.1} parent=1 // pred_check_branch
      %30 = sbr.rel (0) target = $region9
    $region8: #{tpu_custom_call.1} parent=1 // pred_region
      %32 = vsyncadd [#allocation6], 0
      %s34 = sshll.u32 %s1, 4
      %s35 = int_to_ptr.hbm [resolvable:$true] %s34
      %s36 = sshll.u32 [#allocation5], 4
      %s37 = int_to_ptr.vmem [resolvable:$true] %s36
      %39 = dma.hbm_to_vmem [thread:$0]  %s35, 16, %s37, [#allocation6]
    $region9: #{tpu_custom_call.1} parent=1 // pred_fallthru
      _
    // Predicated region
    $region10: #{tpu_custom_call.1} parent=1 // pred_check
      _
    $region11: #{tpu_custom_call.1} parent=1 // pred_check_branch
      %41 = sbr.rel (0) target = $region13
    $region12: #{tpu_custom_call.1} parent=1 // pred_region
      _
    $region13: #{tpu_custom_call.1} parent=1 // pred_fallthru
      _
    // Predicated region
    $region14: #{tpu_custom_call.1} parent=1 // pred_check
      _
    $region15: #{tpu_custom_call.1} parent=1 // pred_check_branch
      %43 = sbr.rel (0) target = $region17
    $region16: #{tpu_custom_call.1} parent=1 // pred_region
      %45 = vsyncadd [#allocation6], 0
      %s46 = sshll.u32 %s3, 4
      %s47 = int_to_ptr.hbm [resolvable:$true] %s46
      %s48 = sshll.u32 [#allocation7], 4
      %s49 = int_to_ptr.vmem [resolvable:$true] %s48
      %54 = dma.hbm_to_vmem [thread:$0]  %s47, 1024, %s49, [#allocation6], 64, 64, 4
    $region17: #{tpu_custom_call.1} parent=1 // pred_fallthru
      _
    // Predicated region
    $region18: #{tpu_custom_call.1} parent=1 // pred_check
      _
    $region19: #{tpu_custom_call.1} parent=1 // pred_check_branch
      %56 = sbr.rel (0) target = $region21
    $region20: #{tpu_custom_call.1} parent=1 // pred_region
      _
    $region21: #{tpu_custom_call.1} parent=1 // pred_fallthru
      _
    // Predicated region
    $region22: #{tpu_custom_call.1} parent=1 // pred_check
      _
    $region23: #{tpu_custom_call.1} parent=1 // pred_check_branch
      %58 = sbr.rel (0) target = $region25
    $region24: #{tpu_custom_call.1} parent=1 // pred_region
      %60 = vsyncadd [#allocation9], 0
      %s61 = sshll.u32 %s5, 4
      %s62 = int_to_ptr.hbm [resolvable:$true] %s61
      %s63 = sshll.u32 [#allocation8], 4
      %s64 = int_to_ptr.vmem [resolvable:$true] %s63
      %69 = dma.hbm_to_vmem [thread:$0]  %s62, 1024, %s64, [#allocation9], 64, 64, 4
    $region25: #{tpu_custom_call.1} parent=1 // pred_fallthru
      _
    // Predicated region
    $region26: #{tpu_custom_call.1} parent=1 // pred_check
      _
    $region27: #{tpu_custom_call.1} parent=1 // pred_check_branch
      %71 = sbr.rel (0) target = $region29
    $region28: #{tpu_custom_call.1} parent=1 // pred_region
      _
    $region29: #{tpu_custom_call.1} parent=1 // pred_fallthru
      _
    // Predicated region
    $region30: #{tpu_custom_call.1} parent=1 // pred_check
      _
    $region31: #{tpu_custom_call.1} parent=1 // pred_check_branch
      %73 = sbr.rel (0) target = $region33
    $region32: #{tpu_custom_call.1} parent=1 // pred_region
      %75 = vsyncadd [#allocation9], 0
      %s76 = sshll.u32 %s7, 4
      %s77 = int_to_ptr.hbm [resolvable:$true] %s76
      %s78 = sshll.u32 [#allocation10], 4
      %s79 = int_to_ptr.vmem [resolvable:$true] %s78
      %84 = dma.hbm_to_vmem [thread:$0]  %s77, 1024, %s79, [#allocation9], 64, 64, 4
    $region33: #{tpu_custom_call.1} parent=1 // pred_fallthru
      _
    // Predicated region
    $region34: #{tpu_custom_call.1} parent=1 // pred_check
      _
    $region35: #{tpu_custom_call.1} parent=1 // pred_check_branch
      %86 = sbr.rel (0) target = $region37
    $region36: #{tpu_custom_call.1} parent=1 // pred_region
      _
    $region37: #{tpu_custom_call.1} parent=1 // pred_fallthru
      _
    // Predicated region
    $region38: #{tpu_custom_call.1} parent=1 // pred_check
      _
    $region39: #{tpu_custom_call.1} parent=1 // pred_check_branch
      %88 = sbr.rel (0) target = $region41
    $region40: #{tpu_custom_call.1} parent=1 // pred_region
      %90 = dma.done [#allocation3], 128
    $region41: #{tpu_custom_call.1} parent=1 // pred_fallthru
      _
    // Predicated region
    $region42: #{tpu_custom_call.1} parent=1 // pred_check
      _
    $region43: #{tpu_custom_call.1} parent=1 // pred_check_branch
      %92 = sbr.rel (0) target = $region45
    $region44: #{tpu_custom_call.1} parent=1 // pred_region
      %94 = dma.done [#allocation6], 16
    $region45: #{tpu_custom_call.1} parent=1 // pred_fallthru
      _
    // Predicated region
    $region46: #{tpu_custom_call.1} parent=1 // pred_check
      _
    $region47: #{tpu_custom_call.1} parent=1 // pred_check_branch
      %96 = sbr.rel (0) target = $region49
    $region48: #{tpu_custom_call.1} parent=1 // pred_region
      %98 = dma.done [#allocation6], 1024
    $region49: #{tpu_custom_call.1} parent=1 // pred_fallthru
      _
    // Predicated region
    $region50: #{tpu_custom_call.1} parent=1 // pred_check
      _
    $region51: #{tpu_custom_call.1} parent=1 // pred_check_branch
      %100 = sbr.rel (0) target = $region53
    $region52: #{tpu_custom_call.1} parent=1 // pred_region
      %102 = dma.done [#allocation9], 1024
    $region53: #{tpu_custom_call.1} parent=1 // pred_fallthru
      _
    // Predicated region
    $region54: #{tpu_custom_call.1} parent=1 // pred_check
      _
    $region55: #{tpu_custom_call.1} parent=1 // pred_check_branch
      %104 = sbr.rel (0) target = $region57
    $region56: #{tpu_custom_call.1} parent=1 // pred_region
      %106 = dma.done [#allocation9], 1024
    $region57: #{tpu_custom_call.1} parent=1 // pred_fallthru
      _
    %v107 = vld [vmem:[#allocation2] sm:$0xff]
    %v108 = vld [vmem:[#allocation5] sm:$0x1]
    %v110 = vperm.slane %v108, 0
    %v112 = vmul.f32 %v107, %v110
    %v113 = vld [vmem:[%s2] sm:$0x1]
    %v115 = vperm.slane %v113, 0
    %v117 = vadd.f32 %v112, %v115
    %v118 = vld [vmem:[#allocation7] sm:$0xf]
    %v119 = vld [vmem:[#allocation7 + $0x4] sm:$0xf]
    %v120 = vld [vmem:[#allocation7 + $0x8] sm:$0xf]
    %v121 = vld [vmem:[#allocation7 + $0xc] sm:$0xf]
    %v122 = vld [vmem:[#allocation7 + $0x10] sm:$0xf]
    %v123 = vld [vmem:[#allocation7 + $0x14] sm:$0xf]
    %v124 = vld [vmem:[#allocation7 + $0x18] sm:$0xf]
    %v125 = vld [vmem:[#allocation7 + $0x1c] sm:$0xf]
    %v126 = vld [vmem:[#allocation7 + $0x20] sm:$0xf]
    %v127 = vld [vmem:[#allocation7 + $0x24] sm:$0xf]
    %v128 = vld [vmem:[#allocation7 + $0x28] sm:$0xf]
    %v129 = vld [vmem:[#allocation7 + $0x2c] sm:$0xf]
    %v130 = vld [vmem:[#allocation7 + $0x30] sm:$0xf]
    %v131 = vld [vmem:[#allocation7 + $0x34] sm:$0xf]
    %v132 = vld [vmem:[#allocation7 + $0x38] sm:$0xf]
    %v133 = vld [vmem:[#allocation7 + $0x3c] sm:$0xf]
    %v134 = vld [vmem:[%s4] sm:$0x1]
    %v135 = vpack.c.bf16 %v117, %v117
    %v137 = vperm.slane %v134, 0
    %v155 = vunpack.c.l.b16 %v118
    %v156 = vunpack.c.l.b16 %v119
    %v157 = vunpack.c.l.b16 %v120
    %v158 = vunpack.c.l.b16 %v121
    %v159 = vunpack.c.l.b16 %v122
    %v160 = vunpack.c.l.b16 %v123
    %v161 = vunpack.c.l.b16 %v124
    %v162 = vunpack.c.l.b16 %v125
    %v163 = vunpack.c.l.b16 %v126
    %v164 = vunpack.c.l.b16 %v127
    %v165 = vunpack.c.l.b16 %v128
    %v166 = vunpack.c.l.b16 %v129
    %v167 = vunpack.c.l.b16 %v130
    %v168 = vunpack.c.l.b16 %v131
    %v169 = vunpack.c.l.b16 %v132
    %v170 = vunpack.c.l.b16 %v133
    %v171 = vpack.c.b16 %v156, %v155
    %v172 = vpack.c.b16 %v158, %v157
    %v173 = vpack.c.b16 %v160, %v159
    %v174 = vpack.c.b16 %v162, %v161
    %v175 = vpack.c.b16 %v164, %v163
    %v176 = vpack.c.b16 %v166, %v165
    %v177 = vpack.c.b16 %v168, %v167
    %v178 = vpack.c.b16 %v170, %v169
    %187 = vmatpush.bf16.msra.mxu0 %v178
    %188 = vmatpush.bf16.msra.mxu0 %v177
    %189 = vmatpush.bf16.msra.mxu0 %v176
    %190 = vmatpush.bf16.msra.mxu0 %v175
    %191 = vmatpush.bf16.msra.mxu0 %v174
    %192 = vmatpush.bf16.msra.mxu0 %v173
    %193 = vmatpush.bf16.msra.mxu0 %v172
    %194 = vmatpush.bf16.msra.mxu0 %v171
    %195 = vmatmul.bf16.gmra.mxu0 %v135
    %v196 = vpop.f32.mrf.mxu0
    %v197 = vadd.f32 %v137, %v196
    %v198 = vpop.f32.mrf.mxu0
    %199 = vdwg.mxu0
    %v200 = vmax.f32 %v197, 0.0
    %v201 = vld [vmem:[#allocation8] sm:$0xf]
    %v202 = vld [vmem:[#allocation8 + $0x4] sm:$0xf]
    %v203 = vld [vmem:[#allocation8 + $0x8] sm:$0xf]
    %v204 = vld [vmem:[#allocation8 + $0xc] sm:$0xf]
    %v205 = vld [vmem:[#allocation8 + $0x10] sm:$0xf]
    %v206 = vld [vmem:[#allocation8 + $0x14] sm:$0xf]
    %v207 = vld [vmem:[#allocation8 + $0x18] sm:$0xf]
    %v208 = vld [vmem:[#allocation8 + $0x1c] sm:$0xf]
    %v209 = vld [vmem:[#allocation8 + $0x20] sm:$0xf]
    %v210 = vld [vmem:[#allocation8 + $0x24] sm:$0xf]
    %v211 = vld [vmem:[#allocation8 + $0x28] sm:$0xf]
    %v212 = vld [vmem:[#allocation8 + $0x2c] sm:$0xf]
    %v213 = vld [vmem:[#allocation8 + $0x30] sm:$0xf]
    %v214 = vld [vmem:[#allocation8 + $0x34] sm:$0xf]
    %v215 = vld [vmem:[#allocation8 + $0x38] sm:$0xf]
    %v216 = vld [vmem:[#allocation8 + $0x3c] sm:$0xf]
    %v217 = vld [vmem:[%s6] sm:$0x1]
    %v218 = vpack.c.bf16 %v200, %v200
    %v220 = vperm.slane %v217, 0
    %v238 = vunpack.c.l.b16 %v201
    %v239 = vunpack.c.l.b16 %v202
    %v240 = vunpack.c.l.b16 %v203
    %v241 = vunpack.c.l.b16 %v204
    %v242 = vunpack.c.l.b16 %v205
    %v243 = vunpack.c.l.b16 %v206
    %v244 = vunpack.c.l.b16 %v207
    %v245 = vunpack.c.l.b16 %v208
    %v246 = vunpack.c.l.b16 %v209
    %v247 = vunpack.c.l.b16 %v210
    %v248 = vunpack.c.l.b16 %v211
    %v249 = vunpack.c.l.b16 %v212
    %v250 = vunpack.c.l.b16 %v213
    %v251 = vunpack.c.l.b16 %v214
    %v252 = vunpack.c.l.b16 %v215
    %v253 = vunpack.c.l.b16 %v216
    %v254 = vpack.c.b16 %v239, %v238
    %v255 = vpack.c.b16 %v241, %v240
    %v256 = vpack.c.b16 %v243, %v242
    %v257 = vpack.c.b16 %v245, %v244
    %v258 = vpack.c.b16 %v247, %v246
    %v259 = vpack.c.b16 %v249, %v248
    %v260 = vpack.c.b16 %v251, %v250
    %v261 = vpack.c.b16 %v253, %v252
    %270 = vmatpush.bf16.msra.mxu0 %v261
    %271 = vmatpush.bf16.msra.mxu0 %v260
    %272 = vmatpush.bf16.msra.mxu0 %v259
    %273 = vmatpush.bf16.msra.mxu0 %v258
    %274 = vmatpush.bf16.msra.mxu0 %v257
    %275 = vmatpush.bf16.msra.mxu0 %v256
    %276 = vmatpush.bf16.msra.mxu0 %v255
    %277 = vmatpush.bf16.msra.mxu0 %v254
    %278 = vmatmul.bf16.gmra.mxu0 %v218
    %v279 = vpop.f32.mrf.mxu0
    %v280 = vadd.f32 %v220, %v279
    %v281 = vpop.f32.mrf.mxu0
    %282 = vdwg.mxu0
    %v283 = vmax.f32 %v280, 0.0
    %v284 = vld [vmem:[#allocation10] sm:$0xf]
    %v285 = vld [vmem:[#allocation10 + $0x4] sm:$0xf]
    %v286 = vld [vmem:[#allocation10 + $0x8] sm:$0xf]
    %v287 = vld [vmem:[#allocation10 + $0xc] sm:$0xf]
    %v288 = vld [vmem:[#allocation10 + $0x10] sm:$0xf]
    %v289 = vld [vmem:[#allocation10 + $0x14] sm:$0xf]
    %v290 = vld [vmem:[#allocation10 + $0x18] sm:$0xf]
    %v291 = vld [vmem:[#allocation10 + $0x1c] sm:$0xf]
    %v292 = vld [vmem:[#allocation10 + $0x20] sm:$0xf]
    %v293 = vld [vmem:[#allocation10 + $0x24] sm:$0xf]
    %v294 = vld [vmem:[#allocation10 + $0x28] sm:$0xf]
    %v295 = vld [vmem:[#allocation10 + $0x2c] sm:$0xf]
    %v296 = vld [vmem:[#allocation10 + $0x30] sm:$0xf]
    %v297 = vld [vmem:[#allocation10 + $0x34] sm:$0xf]
    %v298 = vld [vmem:[#allocation10 + $0x38] sm:$0xf]
    %v299 = vld [vmem:[#allocation10 + $0x3c] sm:$0xf]
    %v300 = vld [vmem:[%s8] sm:$0x1]
    %v301 = vpack.c.bf16 %v283, %v283
    %v303 = vperm.slane %v300, 0
    %v321 = vunpack.c.l.b16 %v284
    %v322 = vunpack.c.l.b16 %v285
    %v323 = vunpack.c.l.b16 %v286
    %v324 = vunpack.c.l.b16 %v287
    %v325 = vunpack.c.l.b16 %v288
    %v326 = vunpack.c.l.b16 %v289
    %v327 = vunpack.c.l.b16 %v290
    %v328 = vunpack.c.l.b16 %v291
    %v329 = vunpack.c.l.b16 %v292
    %v330 = vunpack.c.l.b16 %v293
    %v331 = vunpack.c.l.b16 %v294
    %v332 = vunpack.c.l.b16 %v295
    %v333 = vunpack.c.l.b16 %v296
    %v334 = vunpack.c.l.b16 %v297
    %v335 = vunpack.c.l.b16 %v298
    %v336 = vunpack.c.l.b16 %v299
    %v337 = vpack.c.b16 %v322, %v321
    %v338 = vpack.c.b16 %v324, %v323
    %v339 = vpack.c.b16 %v326, %v325
    %v340 = vpack.c.b16 %v328, %v327
    %v341 = vpack.c.b16 %v330, %v329
    %v342 = vpack.c.b16 %v332, %v331
    %v343 = vpack.c.b16 %v334, %v333
    %v344 = vpack.c.b16 %v336, %v335
    %353 = vmatpush.bf16.msra.mxu0 %v344
    %354 = vmatpush.bf16.msra.mxu0 %v343
    %355 = vmatpush.bf16.msra.mxu0 %v342
    %356 = vmatpush.bf16.msra.mxu0 %v341
    %357 = vmatpush.bf16.msra.mxu0 %v340
    %358 = vmatpush.bf16.msra.mxu0 %v339
    %359 = vmatpush.bf16.msra.mxu0 %v338
    %360 = vmatpush.bf16.msra.mxu0 %v337
    %361 = vmatmul.bf16.gmra.mxu0 %v301
    %v362 = vpop.f32.mrf.mxu0
    %v363 = vadd.f32 %v303, %v362
    %v364 = vpop.f32.mrf.mxu0
    %365 = vdwg.mxu0
    %v366 = vtanh.pop %v363
    %367 = vst [vmem:[#allocation11] sm:$0xff] %v366
    // Predicated region
    $region58: #{tpu_custom_call.1} parent=1 // pred_check
      _
    $region59: #{tpu_custom_call.1} parent=1 // pred_check_branch
      %369 = sbr.rel (0) target = $region61
    $region60: #{tpu_custom_call.1} parent=1 // pred_region
      %371 = vsyncadd [#allocation4], 0
      %s373 = sshll.u32 [#allocation11], 4
      %s374 = int_to_ptr.vmem [resolvable:$true] %s373
      %s375 = sshll.u32 %s9, 4
      %s376 = int_to_ptr.hbm [resolvable:$true] %s375
      %378 = dma.vmem_to_hbm [thread:$0]  %s374, 128, %s376, [#allocation4]
    $region61: #{tpu_custom_call.1} parent=1 // pred_fallthru
      _
    // Predicated region
    $region62: #{tpu_custom_call.1} parent=1 // pred_check
      _
    $region63: #{tpu_custom_call.1} parent=1 // pred_check_branch
      %380 = sbr.rel (0) target = $region65
    $region64: #{tpu_custom_call.1} parent=1 // pred_region
      %382 = dma.done [#allocation4], 128
    $region65: #{tpu_custom_call.1} parent=1 // pred_fallthru
      _
    %383 = vsyncpa [#allocation3], 1
    %384 = vsyncpa [#allocation6], 1
    %385 = vsyncpa [#allocation9], 1
    %386 = vsyncpa [#allocation4], 1

</llo_original>
